<compile_context>
chip_gen: v6e
topology: v6e:2x2x1
jax: 0.10.0
libtpu: 0.0.40
codegen_flags: <defaults>
</compile_context>

<pallas_src>
import jax
import jax.numpy as jnp
from jax.experimental import pallas as pl
from jax.experimental.pallas import tpu as pltpu


def _round_up(n: int, m: int) -> int:
    return ((n + m - 1) // m) * m


def qnetwork_kernel(x_ref, w1_ref, b1_ref, w2_ref, b2_ref, out_ref):
    # hidden = relu(x @ W1 + b1); q = hidden @ W2 + b2
    # Weights may be bf16; upcast in-vreg (tiny) and accumulate in f32 on the MXU.
    x = x_ref[...]
    h = jnp.dot(x, w1_ref[...].astype(jnp.float32),
                preferred_element_type=jnp.float32) + b1_ref[...]
    h = jnp.maximum(h, 0.0)
    q = jnp.dot(h, w2_ref[...].astype(jnp.float32),
                preferred_element_type=jnp.float32) + b2_ref[...]
    out_ref[...] = q.astype(out_ref.dtype)


def prepare_qnetwork_params(w1, b1, w2, b2, *, weight_dtype=jnp.bfloat16):
    """One-time param prep (do NOT call per forward pass).

    Takes PyTorch-layout params:
      w1: [hidden_dim, state_dim], b1: [hidden_dim]
      w2: [action_dim, hidden_dim], b2: [action_dim]
    Returns transposed params with ONLY the hidden dim zero-padded to a
    multiple of 128 (lane-dense, costs nothing per call).  The input-feature
    and action dims are kept at their true sizes so per-call HBM traffic is
    not inflated.  Weights are stored in `weight_dtype` (bf16 by default);
    biases stay f32.
    """
    hidden_dim, state_dim = w1.shape
    action_dim = w2.shape[0]
    H = _round_up(hidden_dim, 128)  # padded hidden dim (weights/vregs only)

    w1_t = (jnp.zeros((state_dim, H), weight_dtype)
            .at[:, :hidden_dim].set(w1.T.astype(weight_dtype)))
    b1_p = jnp.zeros((1, H), jnp.float32).at[0, :hidden_dim].set(b1)
    w2_t = (jnp.zeros((H, action_dim), weight_dtype)
            .at[:hidden_dim, :].set(w2.T.astype(weight_dtype)))
    b2_p = b2.astype(jnp.float32).reshape(1, action_dim)
    return (w1_t, b1_p, w2_t, b2_p), (state_dim, action_dim)


def qnetwork_forward(x, params, dims, *, batch_tile=1024):
    """Forward pass: x [B, state_dim] -> q-values [B, action_dim]."""
    w1_t, b1_p, w2_t, b2_p = params
    state_dim, action_dim = dims
    B = x.shape[0]
    assert x.shape[1] == state_dim
    K = state_dim
    H = w1_t.shape[1]

    # Adaptive batch tile:
    #  - small B  -> single grid step (TB = round_up(B, 8)), no per-step overhead
    #  - large B  -> ~batch_tile rows/step, balanced so padding rows stay minimal
    B8 = _round_up(B, 8)
    num_steps = max(1, -(-B8 // batch_tile))          # cdiv
    TB = _round_up(-(-B8 // num_steps), 8)            # rows per step, multiple of 8
    B_pad = TB * num_steps

    # Cheap batch-only pad (no feature-dim padding, no full-array zero fill).
    x_in = x if B_pad == B else jnp.pad(x, ((0, B_pad - B), (0, 0)))

    out = pl.pallas_call(
        qnetwork_kernel,
        out_shape=jax.ShapeDtypeStruct((B_pad, action_dim), x.dtype),
        grid=(num_steps,),
        in_specs=[
            pl.BlockSpec((TB, K), lambda i: (i, 0)),            # x tile (batch-pipelined)
            pl.BlockSpec((K, H), lambda i: (0, 0)),             # W1 (VMEM-resident)
            pl.BlockSpec((1, H), lambda i: (0, 0)),             # b1 (VMEM-resident)
            pl.BlockSpec((H, action_dim), lambda i: (0, 0)),    # W2 (VMEM-resident)
            pl.BlockSpec((1, action_dim), lambda i: (0, 0)),    # b2 (VMEM-resident)
        ],
        out_specs=pl.BlockSpec((TB, action_dim), lambda i: (i, 0)),
        compiler_params=pltpu.CompilerParams(
            dimension_semantics=("parallel",),
        ),
    )(x_in, w1_t, b1_p, w2_t, b2_p)

    return out if B_pad == B else out[:B]


def init_qnetwork_params(key, state_dim, hidden_dim, action_dim):
    """Deterministic init mimicking torch.nn.Linear default U(-1/sqrt(fan_in), +)."""
    k1, k2, k3, k4 = jax.random.split(key, 4)
    bound1 = 1.0 / jnp.sqrt(state_dim)
    bound2 = 1.0 / jnp.sqrt(hidden_dim)
    w1 = jax.random.uniform(k1, (hidden_dim, state_dim), jnp.float32, -bound1, bound1)
    b1 = jax.random.uniform(k2, (hidden_dim,), jnp.float32, -bound1, bound1)
    w2 = jax.random.uniform(k3, (action_dim, hidden_dim), jnp.float32, -bound2, bound2)
    b2 = jax.random.uniform(k4, (action_dim,), jnp.float32, -bound2, bound2)
    return w1, b1, w2, b2


if __name__ == "__main__":
    # Small shapes consistent with the module: batch=2 states of dim 4,
    # hidden_dim=32, action_dim=2 (CartPole-style DQN).
    batch, state_dim, hidden_dim, action_dim = 2, 4, 32, 2

    key = jax.random.PRNGKey(0)
    kx, kp = jax.random.split(key)
    x = jax.random.normal(kx, (batch, state_dim), jnp.float32)
    w1, b1, w2, b2 = init_qnetwork_params(kp, state_dim, hidden_dim, action_dim)

    # One-time param prep (transpose + hidden-pad + bf16), then Pallas forward.
    params, dims = prepare_qnetwork_params(w1, b1, w2, b2)
    out = jax.block_until_ready(qnetwork_forward(x, params, dims))

    # Pure-JAX reference using the same bf16-rounded weights (f32 accumulation),
    # so the comparison isolates kernel correctness from the quantization choice.
    w1_r = w1.astype(jnp.bfloat16).astype(jnp.float32)
    w2_r = w2.astype(jnp.bfloat16).astype(jnp.float32)
    ref = jnp.maximum(x @ w1_r.T + b1, 0.0) @ w2_r.T + b2
    assert out.shape == (batch, action_dim)
    assert jnp.allclose(out, ref, atol=1e-4, rtol=1e-4)

    # Larger RL-style batch: exercises batch-only padding and the multi-step
    # "parallel" grid (3 steps of 1000 rows, zero padding rows).
    xb = jax.random.normal(jax.random.PRNGKey(1), (3000, state_dim), jnp.float32)
    outb = jax.block_until_ready(qnetwork_forward(xb, params, dims, batch_tile=1024))
    refb = jnp.maximum(xb @ w1_r.T + b1, 0.0) @ w2_r.T + b2
    assert outb.shape == (3000, action_dim)
    assert jnp.allclose(outb, refb, atol=1e-3, rtol=1e-3)

    print("KERNEL_OK")
</pallas_src>

<mosaic_0001>
module attributes {stable_mosaic.version = 11 : i64} {
  func.func @qnetwork_kernel(%arg0: i32, %arg1: memref<8x4xf32, #tpu.memory_space<vmem>>, %arg2: memref<4x128xbf16, #tpu.memory_space<vmem>>, %arg3: memref<1x128xf32, #tpu.memory_space<vmem>>, %arg4: memref<128x2xbf16, #tpu.memory_space<vmem>>, %arg5: memref<1x2xf32, #tpu.memory_space<vmem>>, %arg6: memref<8x2xf32, #tpu.memory_space<vmem>>) attributes {dimension_semantics = [#tpu.dimension_semantics<parallel>], iteration_bounds = array<i64: 1>, scalar_prefetch = 0 : i64, scratch_operands = 0 : i64, tpu.core_type = #tpu.core_type<tc>, window_params = [{transform_indices = @transform_0, window_bounds = array<i64: 8, 4>}, {pipeline_mode = #tpu.pipeline_mode<synchronous>, transform_indices = @transform_1, window_bounds = array<i64: 4, 128>}, {pipeline_mode = #tpu.pipeline_mode<synchronous>, transform_indices = @transform_2, window_bounds = array<i64: 1, 128>}, {pipeline_mode = #tpu.pipeline_mode<synchronous>, transform_indices = @transform_3, window_bounds = array<i64: 128, 2>}, {pipeline_mode = #tpu.pipeline_mode<synchronous>, transform_indices = @transform_4, window_bounds = array<i64: 1, 2>}, {transform_indices = @transform_5, window_bounds = array<i64: 8, 2>}]} {
    %c0 = arith.constant 0 : index
    %c0_0 = arith.constant 0 : index
    %0 = vector.load %arg1[%c0, %c0_0] : memref<8x4xf32, #tpu.memory_space<vmem>>, vector<8x4xf32>
    %c0_1 = arith.constant 0 : index
    %c0_2 = arith.constant 0 : index
    %1 = vector.load %arg2[%c0_1, %c0_2] : memref<4x128xbf16, #tpu.memory_space<vmem>>, vector<4x128xbf16>
    %2 = arith.extf %1 : vector<4x128xbf16> to vector<4x128xf32>
    %cst = arith.constant dense<0.000000e+00> : vector<8x128xf32>
    %3 = tpu.matmul %0, %2, %cst {dimension_numbers = #tpu.dot_dimension_numbers<[1], [0], [0], [1], [0, 0, 1, 1], [], []>} : vector<8x4xf32>, vector<4x128xf32>, vector<8x128xf32> -> vector<8x128xf32>
    %c0_3 = arith.constant 0 : index
    %c0_4 = arith.constant 0 : index
    %4 = vector.load %arg3[%c0_3, %c0_4] : memref<1x128xf32, #tpu.memory_space<vmem>>, vector<1x128xf32>
    %5 = vector.broadcast %4 : vector<1x128xf32> to vector<8x128xf32>
    %6 = arith.addf %3, %5 : vector<8x128xf32>
    %cst_5 = arith.constant 0.000000e+00 : f32
    %7 = vector.broadcast %cst_5 : f32 to vector<8x128xf32>
    %8 = arith.maximumf %6, %7 : vector<8x128xf32>
    %c0_6 = arith.constant 0 : index
    %c0_7 = arith.constant 0 : index
    %9 = vector.load %arg4[%c0_6, %c0_7] : memref<128x2xbf16, #tpu.memory_space<vmem>>, vector<128x2xbf16>
    %10 = arith.extf %9 : vector<128x2xbf16> to vector<128x2xf32>
    %cst_8 = arith.constant dense<0.000000e+00> : vector<8x2xf32>
    %11 = tpu.matmul %8, %10, %cst_8 {dimension_numbers = #tpu.dot_dimension_numbers<[1], [0], [0], [1], [0, 0, 1, 1], [], []>} : vector<8x128xf32>, vector<128x2xf32>, vector<8x2xf32> -> vector<8x2xf32>
    %c0_9 = arith.constant 0 : index
    %c0_10 = arith.constant 0 : index
    %12 = vector.load %arg5[%c0_9, %c0_10] : memref<1x2xf32, #tpu.memory_space<vmem>>, vector<1x2xf32>
    %13 = vector.broadcast %12 : vector<1x2xf32> to vector<8x2xf32>
    %14 = arith.addf %11, %13 : vector<8x2xf32>
    %c0_11 = arith.constant 0 : index
    %c0_12 = arith.constant 0 : index
    %15 = vector.load %arg6[%c0_11, %c0_12] : memref<8x2xf32, #tpu.memory_space<vmem>>, vector<8x2xf32>
    tpu.vector_store %arg6[%c0_11, %c0_12], %14 {strides = array<i32>} : memref<8x2xf32, #tpu.memory_space<vmem>>, vector<8x2xf32>,
    return
  }
  func.func @transform_0(%arg0: i32) -> (i32, i32) {
    %c0_i32 = arith.constant 0 : i32
    %c0_i32_0 = arith.constant 0 : i32
    return %arg0, %c0_i32 : i32, i32
  }
  func.func @transform_1(%arg0: i32) -> (i32, i32) {
    %c0_i32 = arith.constant 0 : i32
    %c0_i32_0 = arith.constant 0 : i32
    %c0_i32_1 = arith.constant 0 : i32
    return %c0_i32, %c0_i32_0 : i32, i32
  }
  func.func @transform_2(%arg0: i32) -> (i32, i32) {
    %c0_i32 = arith.constant 0 : i32
    %c0_i32_0 = arith.constant 0 : i32
    %c0_i32_1 = arith.constant 0 : i32
    return %c0_i32, %c0_i32_0 : i32, i32
  }
  func.func @transform_3(%arg0: i32) -> (i32, i32) {
    %c0_i32 = arith.constant 0 : i32
    %c0_i32_0 = arith.constant 0 : i32
    %c0_i32_1 = arith.constant 0 : i32
    return %c0_i32, %c0_i32_0 : i32, i32
  }
  func.func @transform_4(%arg0: i32) -> (i32, i32) {
    %c0_i32 = arith.constant 0 : i32
    %c0_i32_0 = arith.constant 0 : i32
    %c0_i32_1 = arith.constant 0 : i32
    return %c0_i32, %c0_i32_0 : i32, i32
  }
  func.func @transform_5(%arg0: i32) -> (i32, i32) {
    %c0_i32 = arith.constant 0 : i32
    %c0_i32_0 = arith.constant 0 : i32
    return %arg0, %c0_i32 : i32, i32
  }
}

</mosaic_0001>

<llo_original>
// kernel: tpu_custom_call.1
$region0: #{tpu_custom_call.1}
  #allocation0 [shape = 'u32[]', space=smem, size = 0x4, offset = 0x4, fixed_abs, tag = 'smem constant byte address 0x4 - core index']
  #allocation1 [shape = 'u32[144,128]{1,0:T(1,128)}', space=vmem, size = 0x12000, scoped, tag = 'internal scratch']
  %s0 = inlined_call_operand.vmem [shape: f32[8,4], index: 0, kind: input, shape index: {}]
  %s1 = inlined_call_operand.vmem [shape: bf16[4,128], index: 1, kind: input, shape index: {}]
  %s2 = inlined_call_operand.vmem [shape: f32[1,128], index: 2, kind: input, shape index: {}]
  %s3 = inlined_call_operand.vmem [shape: bf16[128,2], index: 3, kind: input, shape index: {}]
  %s4 = inlined_call_operand.vmem [shape: f32[1,2], index: 4, kind: input, shape index: {}]
  %s5 = inlined_call_operand.vmem [shape: f32[8,2], index: 5, kind: output, shape index: {}]
  %s6 = sld [smem:[#allocation0]]
  $region30: #{tpu_custom_call.1} parent=0
    _
  %s8 = ssub.s32 1, %s6
  %s9 = scalar_select 0, %s8, %s6
  // Predicated region
  $region2: #{tpu_custom_call.1} parent=0 // pred_check
    _
  $region3: #{tpu_custom_call.1} parent=0 // pred_check_branch
    %11 = sbr.rel (0) target = $region5
  $region4: #{tpu_custom_call.1} parent=0 // pred_region
    _
  $region5: #{tpu_custom_call.1} parent=0 // pred_fallthru
    _
  // Predicated region
  $region6: #{tpu_custom_call.1} parent=0 // pred_check
    _
  $region7: #{tpu_custom_call.1} parent=0 // pred_check_branch
    %13 = sbr.rel (0) target = $region9
  $region8: #{tpu_custom_call.1} parent=0 // pred_region
    _
  $region9: #{tpu_custom_call.1} parent=0 // pred_fallthru
    _
  // Predicated region
  $region10: #{tpu_custom_call.1} parent=0 // pred_check
    _
  $region11: #{tpu_custom_call.1} parent=0 // pred_check_branch
    %15 = sbr.rel (0) target = $region13
  $region12: #{tpu_custom_call.1} parent=0 // pred_region
    _
  $region13: #{tpu_custom_call.1} parent=0 // pred_fallthru
    _
  // Predicated region
  $region14: #{tpu_custom_call.1} parent=0 // pred_check
    _
  $region15: #{tpu_custom_call.1} parent=0 // pred_check_branch
    %17 = sbr.rel (0) target = $region17
  $region16: #{tpu_custom_call.1} parent=0 // pred_region
    _
  $region17: #{tpu_custom_call.1} parent=0 // pred_fallthru
    _
  // Predicated region
  $region18: #{tpu_custom_call.1} parent=0 // pred_check
    _
  $region19: #{tpu_custom_call.1} parent=0 // pred_check_branch
    %19 = sbr.rel (0) target = $region21
  $region20: #{tpu_custom_call.1} parent=0 // pred_region
    _
  $region21: #{tpu_custom_call.1} parent=0 // pred_fallthru
    _
  %v20 = vld [vmem:[%s0] sm:$0xff]
  %v21 = vld [vmem:[%s1] sm:$0x3]
  %v22 = vunpack.c.l.bf16 %v21
  %v23 = vld [vmem:[%s2] sm:$0x1]
  %v25 = vlaneseq
  %v26 = vshrl.u32 %v25, 7
  %v27 = vsub.s32 0, %v26
  %v28 = vrot.slane %v23, %v27
  %vm30 = vcmask 31744
  %v32 = vsel %vm30, %v20, 0
  %vm34 = vcmask 1043456
  %v36 = vsel %vm34, %v22, 0
  %38 = vmatprep.subr.mxu0 0.0
  %39 = vmatpush1.msra.mxu0 0.0
  %40 = vmatprep.subr.mxu0 0.0
  %41 = vmatpush1.msra.mxu0 0.0
  %42 = vmatprep.subr.mxu0 0.0
  %43 = vmatpush1.msra.mxu0 0.0
  %44 = vmatprep.subr.mxu0 0.0
  %45 = vmatpush1.msra.mxu0 0.0
  %46 = vmatprep.subr.mxu0 0.0
  %47 = vmatpush1.msra.mxu0 0.0
  %48 = vmatprep.subr.mxu0 0.0
  %49 = vmatpush1.msra.mxu0 0.0
  %50 = vmatprep.subr.mxu0 0.0
  %51 = vmatpush1.msra.mxu0 0.0
  %52 = vmatprep.subr.mxu0 0.0
  %53 = vmatpush1.msra.mxu0 0.0
  %54 = vmatprep.subr.mxu0 0.0
  %55 = vmatpush1.msra.mxu0 0.0
  %56 = vmatprep.subr.mxu0 0.0
  %57 = vmatpush1.msra.mxu0 0.0
  %58 = vmatprep.subr.mxu0 0.0
  %59 = vmatpush1.msra.mxu0 0.0
  %60 = vmatprep.subr.mxu0 0.0
  %61 = vmatpush1.msra.mxu0 0.0
  %62 = vmatprep.subr.mxu0 0.0
  %63 = vmatpush1.msra.mxu0 0.0
  %64 = vmatprep.subr.mxu0 0.0
  %65 = vmatpush1.msra.mxu0 0.0
  %66 = vmatprep.subr.mxu0 0.0
  %67 = vmatpush1.msra.mxu0 0.0
  %68 = vmatprep.subr.mxu0 0.0
  %69 = vmatpush1.msra.mxu0 %v36
  %70 = vmatprep.subr.mxu0 0.0
  %71 = vmatpush2.msra.mxu0 0.0
  %72 = vmatprep.subr.mxu0 0.0
  %73 = vmatpush2.msra.mxu0 0.0
  %74 = vmatprep.subr.mxu0 0.0
  %75 = vmatpush2.msra.mxu0 0.0
  %76 = vmatprep.subr.mxu0 0.0
  %77 = vmatpush2.msra.mxu0 0.0
  %78 = vmatprep.subr.mxu0 0.0
  %79 = vmatpush2.msra.mxu0 0.0
  %80 = vmatprep.subr.mxu0 0.0
  %81 = vmatpush2.msra.mxu0 0.0
  %82 = vmatprep.subr.mxu0 0.0
  %83 = vmatpush2.msra.mxu0 0.0
  %84 = vmatprep.subr.mxu0 0.0
  %85 = vmatpush2.msra.mxu0 0.0
  %86 = vmatprep.subr.mxu0 0.0
  %87 = vmatpush2.msra.mxu0 0.0
  %88 = vmatprep.subr.mxu0 0.0
  %89 = vmatpush2.msra.mxu0 0.0
  %90 = vmatprep.subr.mxu0 0.0
  %91 = vmatpush2.msra.mxu0 0.0
  %92 = vmatprep.subr.mxu0 0.0
  %93 = vmatpush2.msra.mxu0 0.0
  %94 = vmatprep.subr.mxu0 0.0
  %95 = vmatpush2.msra.mxu0 0.0
  %96 = vmatprep.subr.mxu0 0.0
  %97 = vmatpush2.msra.mxu0 0.0
  %98 = vmatprep.subr.mxu0 0.0
  %99 = vmatpush2.msra.mxu0 0.0
  %100 = vmatprep.subr.mxu0 0.0
  %101 = vmatpush2.msra.mxu0 0.0
  %102 = vmatprep.mubr.f32.mxu0 0.0
  %103 = vmatmul.mubr.f32.gmra.mxu0 %v32
  %v104 = vpop.f32.mrf.mxu0
  %v105 = vadd.f32 %v28, %v104
  %v106 = vpop.f32.mrf.mxu0
  %107 = vdwg.mxu0
  %v108 = vmax.f32 %v105, 0.0
  %v109 = vld [vmem:[%s3] sm:$0xf]
  %v110 = vld [vmem:[%s3 + $0x4] sm:$0xf]
  %v111 = vld [vmem:[%s3 + $0x8] sm:$0xf]
  %v112 = vld [vmem:[%s3 + $0xc] sm:$0xf]
  %v113 = vld [vmem:[%s3 + $0x10] sm:$0xf]
  %v114 = vld [vmem:[%s3 + $0x14] sm:$0xf]
  %v115 = vld [vmem:[%s3 + $0x18] sm:$0xf]
  %v116 = vld [vmem:[%s3 + $0x1c] sm:$0xf]
  %v117 = vld [vmem:[%s3 + $0x20] sm:$0xf]
  %v118 = vld [vmem:[%s3 + $0x24] sm:$0xf]
  %v119 = vld [vmem:[%s3 + $0x28] sm:$0xf]
  %v120 = vld [vmem:[%s3 + $0x2c] sm:$0xf]
  %v121 = vld [vmem:[%s3 + $0x30] sm:$0xf]
  %v122 = vld [vmem:[%s3 + $0x34] sm:$0xf]
  %v123 = vld [vmem:[%s3 + $0x38] sm:$0xf]
  %v124 = vld [vmem:[%s3 + $0x3c] sm:$0xf]
  %v125 = vunpack.c.l.bf16 %v109
  %v126 = vunpack.c.l.bf16 %v110
  %v127 = vunpack.c.l.bf16 %v111
  %v128 = vunpack.c.l.bf16 %v112
  %v129 = vunpack.c.l.bf16 %v113
  %v130 = vunpack.c.l.bf16 %v114
  %v131 = vunpack.c.l.bf16 %v115
  %v132 = vunpack.c.l.bf16 %v116
  %v133 = vunpack.c.l.bf16 %v117
  %v134 = vunpack.c.l.bf16 %v118
  %v135 = vunpack.c.l.bf16 %v119
  %v136 = vunpack.c.l.bf16 %v120
  %v137 = vunpack.c.l.bf16 %v121
  %v138 = vunpack.c.l.bf16 %v122
  %v139 = vunpack.c.l.bf16 %v123
  %v140 = vunpack.c.l.bf16 %v124
  %v141 = vld [vmem:[%s4] sm:$0x1]
  %v143 = vlaneseq
  %v144 = vshrl.u32 %v143, 7
  %v145 = vsub.s32 0, %v144
  %v146 = vrot.slane %v141, %v145
  %148 = vmatprep.subr.mxu0 0.0
  %149 = vmatpush1.msra.mxu0 %v140
  %150 = vmatprep.subr.mxu0 0.0
  %151 = vmatpush1.msra.mxu0 %v139
  %152 = vmatprep.subr.mxu0 0.0
  %153 = vmatpush1.msra.mxu0 %v138
  %154 = vmatprep.subr.mxu0 0.0
  %155 = vmatpush1.msra.mxu0 %v137
  %156 = vmatprep.subr.mxu0 0.0
  %157 = vmatpush1.msra.mxu0 %v136
  %158 = vmatprep.subr.mxu0 0.0
  %159 = vmatpush1.msra.mxu0 %v135
  %160 = vmatprep.subr.mxu0 0.0
  %161 = vmatpush1.msra.mxu0 %v134
  %162 = vmatprep.subr.mxu0 0.0
  %163 = vmatpush1.msra.mxu0 %v133
  %164 = vmatprep.subr.mxu0 0.0
  %165 = vmatpush1.msra.mxu0 %v132
  %166 = vmatprep.subr.mxu0 0.0
  %167 = vmatpush1.msra.mxu0 %v131
  %168 = vmatprep.subr.mxu0 0.0
  %169 = vmatpush1.msra.mxu0 %v130
  %170 = vmatprep.subr.mxu0 0.0
  %171 = vmatpush1.msra.mxu0 %v129
  %172 = vmatprep.subr.mxu0 0.0
  %173 = vmatpush1.msra.mxu0 %v128
  %174 = vmatprep.subr.mxu0 0.0
  %175 = vmatpush1.msra.mxu0 %v127
  %176 = vmatprep.subr.mxu0 0.0
  %177 = vmatpush1.msra.mxu0 %v126
  %178 = vmatprep.subr.mxu0 0.0
  %179 = vmatpush1.msra.mxu0 %v125
  %180 = vmatprep.subr.mxu0 0.0
  %181 = vmatpush2.msra.mxu0 0.0
  %182 = vmatprep.subr.mxu0 0.0
  %183 = vmatpush2.msra.mxu0 0.0
  %184 = vmatprep.subr.mxu0 0.0
  %185 = vmatpush2.msra.mxu0 0.0
  %186 = vmatprep.subr.mxu0 0.0
  %187 = vmatpush2.msra.mxu0 0.0
  %188 = vmatprep.subr.mxu0 0.0
  %189 = vmatpush2.msra.mxu0 0.0
  %190 = vmatprep.subr.mxu0 0.0
  %191 = vmatpush2.msra.mxu0 0.0
  %192 = vmatprep.subr.mxu0 0.0
  %193 = vmatpush2.msra.mxu0 0.0
  %194 = vmatprep.subr.mxu0 0.0
  %195 = vmatpush2.msra.mxu0 0.0
  %196 = vmatprep.subr.mxu0 0.0
  %197 = vmatpush2.msra.mxu0 0.0
  %198 = vmatprep.subr.mxu0 0.0
  %199 = vmatpush2.msra.mxu0 0.0
  %200 = vmatprep.subr.mxu0 0.0
  %201 = vmatpush2.msra.mxu0 0.0
  %202 = vmatprep.subr.mxu0 0.0
  %203 = vmatpush2.msra.mxu0 0.0
  %204 = vmatprep.subr.mxu0 0.0
  %205 = vmatpush2.msra.mxu0 0.0
  %206 = vmatprep.subr.mxu0 0.0
  %207 = vmatpush2.msra.mxu0 0.0
  %208 = vmatprep.subr.mxu0 0.0
  %209 = vmatpush2.msra.mxu0 0.0
  %210 = vmatprep.subr.mxu0 0.0
  %211 = vmatpush2.msra.mxu0 0.0
  %212 = vmatprep.mubr.f32.mxu0 0.0
  %213 = vmatmul.mubr.f32.gmra.mxu0 %v108
  %v214 = vpop.f32.mrf.mxu0
  %v215 = vadd.f32 %v146, %v214
  %v216 = vpop.f32.mrf.mxu0
  %217 = vdwg.mxu0
  %vm218 = vcmask 15360
  %219 = vst.msk [vmem:[%s5] sm:$0xff] %vm218, %v215
  // Predicated region
  $region22: #{tpu_custom_call.1} parent=0 // pred_check
    _
  $region23: #{tpu_custom_call.1} parent=0 // pred_check_branch
    %221 = sbr.rel (0) target = $region25
  $region24: #{tpu_custom_call.1} parent=0 // pred_region
    _
  $region25: #{tpu_custom_call.1} parent=0 // pred_fallthru
    _
  // Predicated region
  $region26: #{tpu_custom_call.1} parent=0 // pred_check
    _
  $region27: #{tpu_custom_call.1} parent=0 // pred_check_branch
    %223 = sbr.rel (0) target = $region29
  $region28: #{tpu_custom_call.1} parent=0 // pred_region
    _
  $region29: #{tpu_custom_call.1} parent=0 // pred_fallthru
    _

</llo_original>
